<compile_context>
chip_gen: v6e
topology: v6e:2x2x1
jax: 0.10.0
libtpu: 0.0.40
codegen_flags: <defaults>
</compile_context>

<pallas_src>
import functools
import math

import jax
import jax.numpy as jnp
from jax.experimental import pallas as pl
from jax.experimental.pallas import tpu as pltpu

F32 = jnp.float32
BF16 = jnp.bfloat16


def _round_up(v, m):
    return (v + m - 1) // m * m


def _vmem_limit_bytes():
    """Per-generation VMEM budget with headroom for compiler-internal scratch."""
    cap = None
    try:
        cap = getattr(pltpu.get_tpu_info(), "vmem_capacity_bytes", None)
    except Exception:
        cap = None
    if cap is None:
        cap = 64 * 1024 * 1024            # conservative (v7x-sized) fallback
    headroom = 16 * 1024 * 1024
    # v7x (64 MiB)  -> 48 MiB ; v5e/v6e (128 MiB) -> 100 MiB.
    return max(32 * 1024 * 1024, min(cap - headroom, 100 * 1024 * 1024))


def _spec(shape, index_map, *, buffers=None):
    """BlockSpec with optional buffer-count override (graceful fallback)."""
    if buffers is not None:
        try:
            return pl.BlockSpec(shape, index_map,
                                pipeline_mode=pl.Buffered(buffers))
        except (TypeError, AttributeError):
            pass
    return pl.BlockSpec(shape, index_map)


def _pad2(a, rows, cols):
    pr, pc = rows - a.shape[0], cols - a.shape[1]
    if pr == 0 and pc == 0:
        return a
    return jnp.pad(a, ((0, pr), (0, pc)))


# ---------------------------------------------------------------------------
# Fused single-tile kernel: out = adj @ (x @ W_eff + b_eff) + b2
# ---------------------------------------------------------------------------
def _fused_kernel(x_ref, adj_ref, w_ref, be_ref, b2_ref, o_ref):
    support = jnp.dot(x_ref[...], w_ref[...],
                      preferred_element_type=jnp.float32) + be_ref[...]
    out = jnp.dot(adj_ref[...], support.astype(adj_ref.dtype),
                  preferred_element_type=jnp.float32)
    o_ref[...] = out + b2_ref[...]


# ---------------------------------------------------------------------------
# Stage 1: support = x @ W_eff + b_eff          (folded fc1 + gc1 linear part)
# ---------------------------------------------------------------------------
def _support_kernel(x_ref, w_ref, be_ref, o_ref):
    acc = jnp.dot(x_ref[...], w_ref[...], preferred_element_type=jnp.float32)
    o_ref[...] = (acc + be_ref[...]).astype(o_ref.dtype)


# ---------------------------------------------------------------------------
# Stage 2: out = adj @ support + b2   (row tiles i, reduction tiles k)
#          accumulates directly into the resident f32 output tile
# ---------------------------------------------------------------------------
def _propagate_kernel(adj_ref, s_ref, b2_ref, o_ref, *, tk):
    k = pl.program_id(1)

    @pl.when(k == 0)
    def _():
        o_ref[...] = jnp.zeros_like(o_ref)

    off = pl.multiple_of(k * tk, tk)
    o_ref[...] += jnp.dot(adj_ref[...], s_ref[pl.ds(off, tk), :],
                          preferred_element_type=jnp.float32)

    @pl.when(k == pl.num_programs(1) - 1)
    def _():
        o_ref[...] += b2_ref[...]


def decoder_gcn(x, adj, w1, b1, w2, b2, *, tm=1024, tk=1024):
    """x: [N, in_feat], adj: [N, N] (pre-normalized dense), w1: [in, hidden],
    b1: [hidden], w2: [hidden, out], b2: [out]  ->  [N, out] (float32)."""
    n, in_feat = x.shape
    out_feat = w2.shape[1]
    in_pad = _round_up(in_feat, 128)
    out_pad = _round_up(out_feat, 128)

    # Host-side fold of the two per-node linears (removes the sub-128 hidden dim).
    w_eff = w1.astype(F32) @ w2.astype(F32)                  # [in,  out]
    b_eff = b1.astype(F32) @ w2.astype(F32)                  # [out]

    w_p = _pad2(w_eff.astype(BF16), in_pad, out_pad)
    be_p = _pad2(b_eff.reshape(1, -1), 1, out_pad)
    b2_p = _pad2(b2.astype(F32).reshape(1, -1), 1, out_pad)

    vlim = _vmem_limit_bytes()

    # ---------------- Fused single-tile path (small N) ----------------------
    if n <= max(tm, tk):
        n_pad = max(_round_up(n, 16), 16)
        x_p = _pad2(x.astype(BF16), n_pad, in_pad)
        adj_p = _pad2(adj.astype(BF16), n_pad, n_pad)
        out_p = pl.pallas_call(
            _fused_kernel,
            out_shape=jax.ShapeDtypeStruct((n_pad, out_pad), F32),
            compiler_params=pltpu.CompilerParams(vmem_limit_bytes=vlim),
        )(x_p, adj_p, w_p, be_p, b2_p)
        return out_p[:n, :out_feat]

    # ---------------- Two-stage path (large N) ------------------------------
    step = math.lcm(tm, tk)
    n_pad = _round_up(n, step)
    x_p = _pad2(x.astype(BF16), n_pad, in_pad)
    adj_p = _pad2(adj.astype(BF16), n_pad, n_pad)

    # Stage 1: lane-dense bf16 support slab, computed once (row-tiled).
    support = pl.pallas_call(
        _support_kernel,
        out_shape=jax.ShapeDtypeStruct((n_pad, out_pad), BF16),
        grid_spec=pltpu.PrefetchScalarGridSpec(
            num_scalar_prefetch=0,
            grid=(n_pad // tm,),
            in_specs=[
                _spec((tm, in_pad), lambda i: (i, 0)),
                _spec((in_pad, out_pad), lambda i: (0, 0), buffers=1),
                _spec((1, out_pad), lambda i: (0, 0), buffers=1),
            ],
            out_specs=pl.BlockSpec((tm, out_pad), lambda i: (i, 0)),
        ),
        compiler_params=pltpu.CompilerParams(
            dimension_semantics=("parallel",),
            vmem_limit_bytes=vlim),
        cost_estimate=pl.CostEstimate(
            flops=2 * n_pad * in_pad * out_pad,
            transcendentals=0,
            bytes_accessed=2 * (n_pad * in_pad + in_pad * out_pad
                                + n_pad * out_pad)),
    )(x_p, w_p, be_p)

    # Stage 2: out = adj @ support + b2.  adj streams as big bf16 tiles,
    # the support slab stays VMEM-resident single-buffered, and accumulation
    # goes directly into the resident f32 output tile.
    out_p = pl.pallas_call(
        functools.partial(_propagate_kernel, tk=tk),
        out_shape=jax.ShapeDtypeStruct((n_pad, out_pad), F32),
        grid_spec=pltpu.PrefetchScalarGridSpec(
            num_scalar_prefetch=0,
            grid=(n_pad // tm, n_pad // tk),
            in_specs=[
                _spec((tm, tk), lambda i, k: (i, k)),                     # adj (streams)
                _spec((n_pad, out_pad), lambda i, k: (0, 0), buffers=1),  # support (resident)
                _spec((1, out_pad), lambda i, k: (0, 0), buffers=1),      # b2
            ],
            out_specs=pl.BlockSpec((tm, out_pad), lambda i, k: (i, 0)),
        ),
        compiler_params=pltpu.CompilerParams(
            dimension_semantics=("parallel", "arbitrary"),
            vmem_limit_bytes=vlim),
        cost_estimate=pl.CostEstimate(
            flops=2 * n_pad * n_pad * out_pad,
            transcendentals=0,
            bytes_accessed=2 * n_pad * n_pad + 2 * n_pad * out_pad
                           + 4 * n_pad * out_pad),
    )(adj_p, support, b2_p)

    return out_p[:n, :out_feat]


def _reference(x, adj, w1, b1, w2, b2):
    h = x @ w1 + b1
    return adj @ (h @ w2) + b2


def _make_inputs(key, n, in_feat, hidden_feat, out_feat):
    k_x, k_a, k_w1, k_b1, k_w2, k_b2 = jax.random.split(key, 6)
    x = jax.random.normal(k_x, (n, in_feat), dtype=jnp.float32)

    # Dense symmetric adjacency with self loops + D^-1/2 normalization.
    a_raw = (jax.random.uniform(k_a, (n, n)) > 0.7).astype(jnp.float32)
    a_sym = jnp.clip(a_raw + a_raw.T, 0.0, 1.0) + jnp.eye(n, dtype=jnp.float32)
    deg = jnp.sum(a_sym, axis=1)
    d_inv_sqrt = 1.0 / jnp.sqrt(deg)
    adj = a_sym * d_inv_sqrt[:, None] * d_inv_sqrt[None, :]

    def uinit(k, shape, fan_in):
        bound = 1.0 / jnp.sqrt(fan_in)
        return jax.random.uniform(k, shape, jnp.float32, -bound, bound)

    w1 = uinit(k_w1, (in_feat, hidden_feat), in_feat)       # fc1.weight.T
    b1 = uinit(k_b1, (hidden_feat,), in_feat)               # fc1.bias
    w2 = uinit(k_w2, (hidden_feat, out_feat), hidden_feat)  # gc1.weight
    b2 = uinit(k_b2, (out_feat,), hidden_feat)              # gc1.bias
    return x, adj, w1, b1, w2, b2


if __name__ == "__main__":
    key = jax.random.PRNGKey(0)

    # Case 1: tiny shapes consistent with the module -> fused single-call path.
    N, in_feat, hidden_feat, out_feat = 16, 32, 32, 16
    args = _make_inputs(key, N, in_feat, hidden_feat, out_feat)
    out = jax.block_until_ready(decoder_gcn(*args))
    ref = _reference(*args)
    assert out.shape == (N, out_feat)
    assert jnp.allclose(out, ref, atol=2e-2, rtol=2e-2), (
        float(jnp.max(jnp.abs(out - ref))))

    # Case 2: larger, exercises the two-stage (row, reduction) grid with
    # direct accumulation into the resident output tile (grid = (2, 2)).
    N2 = 256
    args2 = _make_inputs(jax.random.PRNGKey(1), N2, in_feat, hidden_feat,
                         out_feat)
    out2 = jax.block_until_ready(decoder_gcn(*args2, tm=128, tk=128))
    ref2 = _reference(*args2)
    assert out2.shape == (N2, out_feat)
    assert jnp.allclose(out2, ref2, atol=2e-2, rtol=2e-2), (
        float(jnp.max(jnp.abs(out2 - ref2))))

    print("KERNEL_OK")
</pallas_src>

<mosaic_0001>
module attributes {stable_mosaic.version = 11 : i64} {
  func.func @_fused_kernel(%arg0: memref<16x128xbf16, #tpu.memory_space<vmem>>, %arg1: memref<16x16xbf16, #tpu.memory_space<vmem>>, %arg2: memref<128x128xbf16, #tpu.memory_space<vmem>>, %arg3: memref<1x128xf32, #tpu.memory_space<vmem>>, %arg4: memref<1x128xf32, #tpu.memory_space<vmem>>, %arg5: memref<16x128xf32, #tpu.memory_space<vmem>>) attributes {dimension_semantics = [], scalar_prefetch = 0 : i64, scratch_operands = 0 : i64, tpu.core_type = #tpu.core_type<tc>} {
    %c0 = arith.constant 0 : index
    %c0_0 = arith.constant 0 : index
    %0 = vector.load %arg0[%c0, %c0_0] : memref<16x128xbf16, #tpu.memory_space<vmem>>, vector<16x128xbf16>
    %c0_1 = arith.constant 0 : index
    %c0_2 = arith.constant 0 : index
    %1 = vector.load %arg2[%c0_1, %c0_2] : memref<128x128xbf16, #tpu.memory_space<vmem>>, vector<128x128xbf16>
    %cst = arith.constant dense<0.000000e+00> : vector<16x128xf32>
    %2 = tpu.matmul %0, %1, %cst {dimension_numbers = #tpu.dot_dimension_numbers<[1], [0], [0], [1], [0, 0, 1, 1], [], []>} : vector<16x128xbf16>, vector<128x128xbf16>, vector<16x128xf32> -> vector<16x128xf32>
    %c0_3 = arith.constant 0 : index
    %c0_4 = arith.constant 0 : index
    %3 = vector.load %arg3[%c0_3, %c0_4] : memref<1x128xf32, #tpu.memory_space<vmem>>, vector<1x128xf32>
    %4 = vector.broadcast %3 : vector<1x128xf32> to vector<16x128xf32>
    %5 = arith.addf %2, %4 : vector<16x128xf32>
    %c0_5 = arith.constant 0 : index
    %c0_6 = arith.constant 0 : index
    %6 = vector.load %arg1[%c0_5, %c0_6] : memref<16x16xbf16, #tpu.memory_space<vmem>>, vector<16x16xbf16>
    %7 = arith.truncf %5 : vector<16x128xf32> to vector<16x128xbf16>
    %cst_7 = arith.constant dense<0.000000e+00> : vector<16x128xf32>
    %8 = tpu.matmul %6, %7, %cst_7 {dimension_numbers = #tpu.dot_dimension_numbers<[1], [0], [0], [1], [0, 0, 1, 1], [], []>} : vector<16x16xbf16>, vector<16x128xbf16>, vector<16x128xf32> -> vector<16x128xf32>
    %c0_8 = arith.constant 0 : index
    %c0_9 = arith.constant 0 : index
    %9 = vector.load %arg4[%c0_8, %c0_9] : memref<1x128xf32, #tpu.memory_space<vmem>>, vector<1x128xf32>
    %10 = vector.broadcast %9 : vector<1x128xf32> to vector<16x128xf32>
    %11 = arith.addf %8, %10 : vector<16x128xf32>
    %c0_10 = arith.constant 0 : index
    %c0_11 = arith.constant 0 : index
    %12 = vector.load %arg5[%c0_10, %c0_11] : memref<16x128xf32, #tpu.memory_space<vmem>>, vector<16x128xf32>
    tpu.vector_store %arg5[%c0_10, %c0_11], %11 {strides = array<i32>} : memref<16x128xf32, #tpu.memory_space<vmem>>, vector<16x128xf32>,
    return
  }
}

</mosaic_0001>

<llo_original>
// kernel: tpu_custom_call.1
$region0: #{tpu_custom_call.1}
  #allocation0 [shape = 'u32[]', space=smem, size = 0x4, offset = 0x4, fixed_abs, tag = 'smem constant byte address 0x4 - core index']
  #allocation1 [shape = 'u32[144,128]{1,0:T(1,128)}', space=vmem, size = 0x12000, scoped, tag = 'internal scratch']
  %s0 = inlined_call_operand.hbm [shape: bf16[16,128], index: 0, kind: input, shape index: {}]
  %s1 = inlined_call_operand.hbm [shape: bf16[16,16], index: 1, kind: input, shape index: {}]
  %s2 = inlined_call_operand.hbm [shape: bf16[128,128], index: 2, kind: input, shape index: {}]
  %s3 = inlined_call_operand.vmem [shape: f32[1,128], index: 3, kind: input, shape index: {}]
  %s4 = inlined_call_operand.vmem [shape: f32[1,128], index: 4, kind: input, shape index: {}]
  %s5 = inlined_call_operand.hbm [shape: f32[16,128], index: 5, kind: output, shape index: {}]
  %s6 = sld [smem:[#allocation0]]
  $region42: #{tpu_custom_call.1} parent=0
    _
  %s8 = ssub.s32 1, %s6
  %s9 = scalar_select 0, %s8, %s6
  $region1: #{tpu_custom_call.1} parent=0
    #allocation2 [shape = 'u8[4096]{0}', space=vmem, size = 0x1000, scoped, tag = 'input window, operand 0, single buffered']
    #allocation3 [shape = 's32[1]{0}', space=sflag, size = 0x4, scoped, tag = 'scoped memory for tpu_custom_call.1']
    #allocation4 [shape = 's32[1]{0}', space=sflag, size = 0x4, scoped, tag = 'scoped memory for tpu_custom_call.1']
    #allocation5 [shape = 'u8[4096]{0}', space=vmem, size = 0x1000, scoped, tag = 'input window, operand 1, single buffered']
    #allocation6 [shape = 's32[1]{0}', space=sflag, size = 0x4, scoped, tag = 'scoped memory for tpu_custom_call.1']
    #allocation7 [shape = 'u8[32768]{0}', space=vmem, size = 0x8000, scoped, tag = 'input window, operand 2, single buffered']
    #allocation8 [shape = 'u8[8192]{0}', space=vmem, size = 0x2000, scoped, tag = 'output window, operand 0, single buffered']
    %10 = vsyncpa [#allocation3], 0
    %11 = vsyncpa [#allocation6], 0
    %12 = vsyncpa [#allocation4], 0
    // Predicated region
    $region2: #{tpu_custom_call.1} parent=1 // pred_check
      _
    $region3: #{tpu_custom_call.1} parent=1 // pred_check_branch
      %14 = sbr.rel (0) target = $region5
    $region4: #{tpu_custom_call.1} parent=1 // pred_region
      %s16 = ssub.s32 128, 128
      %17 = vsyncadd [#allocation3], %s16
      %s18 = sshll.u32 [#allocation2], 4
      %s19 = int_to_ptr.vmem [resolvable:$true] %s18
      %24 = dma.hbm_to_vmem [thread:$0]  %s0, 128, %s19, [#allocation3], 64, 64, 4
    $region5: #{tpu_custom_call.1} parent=1 // pred_fallthru
      _
    // Predicated region
    $region6: #{tpu_custom_call.1} parent=1 // pred_check
      _
    $region7: #{tpu_custom_call.1} parent=1 // pred_check_branch
      %26 = sbr.rel (0) target = $region9
    $region8: #{tpu_custom_call.1} parent=1 // pred_region
      %s28 = ssub.s32 128, 128
      %29 = vsyncadd [#allocation6], %s28
      %s30 = sshll.u32 [#allocation5], 4
      %s31 = int_to_ptr.vmem [resolvable:$true] %s30
      %36 = dma.hbm_to_vmem [thread:$0]  %s1, 128, %s31, [#allocation6], 64, 64, 4
    $region9: #{tpu_custom_call.1} parent=1 // pred_fallthru
      _
    // Predicated region
    $region10: #{tpu_custom_call.1} parent=1 // pred_check
      _
    $region11: #{tpu_custom_call.1} parent=1 // pred_check_branch
      %38 = sbr.rel (0) target = $region13
    $region12: #{tpu_custom_call.1} parent=1 // pred_region
      %s40 = ssub.s32 1024, 1024
      %41 = vsyncadd [#allocation6], %s40
      %s42 = sshll.u32 [#allocation7], 4
      %s43 = int_to_ptr.vmem [resolvable:$true] %s42
      %48 = dma.hbm_to_vmem [thread:$0]  %s2, 1024, %s43, [#allocation6], 64, 64, 4
    $region13: #{tpu_custom_call.1} parent=1 // pred_fallthru
      _
    // Predicated region
    $region14: #{tpu_custom_call.1} parent=1 // pred_check
      _
    $region15: #{tpu_custom_call.1} parent=1 // pred_check_branch
      %50 = sbr.rel (0) target = $region17
    $region16: #{tpu_custom_call.1} parent=1 // pred_region
      _
    $region17: #{tpu_custom_call.1} parent=1 // pred_fallthru
      _
    // Predicated region
    $region18: #{tpu_custom_call.1} parent=1 // pred_check
      _
    $region19: #{tpu_custom_call.1} parent=1 // pred_check_branch
      %52 = sbr.rel (0) target = $region21
    $region20: #{tpu_custom_call.1} parent=1 // pred_region
      _
    $region21: #{tpu_custom_call.1} parent=1 // pred_fallthru
      _
    // Predicated region
    $region22: #{tpu_custom_call.1} parent=1 // pred_check
      _
    $region23: #{tpu_custom_call.1} parent=1 // pred_check_branch
      %54 = sbr.rel (0) target = $region25
    $region24: #{tpu_custom_call.1} parent=1 // pred_region
      %55 = dma.done [#allocation3], 128
    $region25: #{tpu_custom_call.1} parent=1 // pred_fallthru
      _
    // Predicated region
    $region26: #{tpu_custom_call.1} parent=1 // pred_check
      _
    $region27: #{tpu_custom_call.1} parent=1 // pred_check_branch
      %57 = sbr.rel (0) target = $region29
    $region28: #{tpu_custom_call.1} parent=1 // pred_region
      %58 = dma.done [#allocation6], 128
    $region29: #{tpu_custom_call.1} parent=1 // pred_fallthru
      _
    // Predicated region
    $region30: #{tpu_custom_call.1} parent=1 // pred_check
      _
    $region31: #{tpu_custom_call.1} parent=1 // pred_check_branch
      %60 = sbr.rel (0) target = $region33
    $region32: #{tpu_custom_call.1} parent=1 // pred_region
      %61 = dma.done [#allocation6], 1024
    $region33: #{tpu_custom_call.1} parent=1 // pred_fallthru
      _
    %v63 = vld [vmem:[#allocation2] sm:$0xf]
    %v64 = vld [vmem:[#allocation2 + $0x4] sm:$0xf]
    %v65 = vld [vmem:[#allocation7] sm:$0xf]
    %v66 = vld [vmem:[#allocation7 + $0x4] sm:$0xf]
    %v67 = vld [vmem:[#allocation7 + $0x8] sm:$0xf]
    %v68 = vld [vmem:[#allocation7 + $0xc] sm:$0xf]
    %v69 = vld [vmem:[#allocation7 + $0x10] sm:$0xf]
    %v70 = vld [vmem:[#allocation7 + $0x14] sm:$0xf]
    %v71 = vld [vmem:[#allocation7 + $0x18] sm:$0xf]
    %v72 = vld [vmem:[#allocation7 + $0x1c] sm:$0xf]
    %v73 = vld [vmem:[#allocation7 + $0x20] sm:$0xf]
    %v74 = vld [vmem:[#allocation7 + $0x24] sm:$0xf]
    %v75 = vld [vmem:[#allocation7 + $0x28] sm:$0xf]
    %v76 = vld [vmem:[#allocation7 + $0x2c] sm:$0xf]
    %v77 = vld [vmem:[#allocation7 + $0x30] sm:$0xf]
    %v78 = vld [vmem:[#allocation7 + $0x34] sm:$0xf]
    %v79 = vld [vmem:[#allocation7 + $0x38] sm:$0xf]
    %v80 = vld [vmem:[#allocation7 + $0x3c] sm:$0xf]
    %v81 = vld [vmem:[%s3] sm:$0x1]
    %v83 = vlaneseq
    %v84 = vshrl.u32 %v83, 7
    %v85 = vsub.s32 0, %v84
    %v86 = vrot.slane %v81, %v85
    %v90 = vunpack.c.l.b16 %v63
    %v91 = vunpack.c.l.b16 %v64
    %v92 = vpack.c.b16 %v91, %v90
    %v110 = vunpack.c.l.b16 %v65
    %v111 = vunpack.c.l.b16 %v66
    %v112 = vunpack.c.l.b16 %v67
    %v113 = vunpack.c.l.b16 %v68
    %v114 = vunpack.c.l.b16 %v69
    %v115 = vunpack.c.l.b16 %v70
    %v116 = vunpack.c.l.b16 %v71
    %v117 = vunpack.c.l.b16 %v72
    %v118 = vunpack.c.l.b16 %v73
    %v119 = vunpack.c.l.b16 %v74
    %v120 = vunpack.c.l.b16 %v75
    %v121 = vunpack.c.l.b16 %v76
    %v122 = vunpack.c.l.b16 %v77
    %v123 = vunpack.c.l.b16 %v78
    %v124 = vunpack.c.l.b16 %v79
    %v125 = vunpack.c.l.b16 %v80
    %v126 = vpack.c.b16 %v111, %v110
    %v127 = vpack.c.b16 %v113, %v112
    %v128 = vpack.c.b16 %v115, %v114
    %v129 = vpack.c.b16 %v117, %v116
    %v130 = vpack.c.b16 %v119, %v118
    %v131 = vpack.c.b16 %v121, %v120
    %v132 = vpack.c.b16 %v123, %v122
    %v133 = vpack.c.b16 %v125, %v124
    %142 = vmatprep.subr.bf16.mxu0 0
    %143 = vmatpush1.bf16.msra.mxu0 %v133
    %144 = vmatprep.subr.bf16.mxu0 0
    %145 = vmatpush1.bf16.msra.mxu0 %v132
    %146 = vmatprep.subr.bf16.mxu0 0
    %147 = vmatpush1.bf16.msra.mxu0 %v131
    %148 = vmatprep.subr.bf16.mxu0 0
    %149 = vmatpush1.bf16.msra.mxu0 %v130
    %150 = vmatprep.subr.bf16.mxu0 0
    %151 = vmatpush1.bf16.msra.mxu0 %v129
    %152 = vmatprep.subr.bf16.mxu0 0
    %153 = vmatpush1.bf16.msra.mxu0 %v128
    %154 = vmatprep.subr.bf16.mxu0 0
    %155 = vmatpush1.bf16.msra.mxu0 %v127
    %156 = vmatprep.subr.bf16.mxu0 0
    %157 = vmatpush1.bf16.msra.mxu0 %v126
    %158 = vmatprep.subr.bf16.mxu0 0
    %159 = vmatpush2.bf16.msra.mxu0 0
    %160 = vmatprep.subr.bf16.mxu0 0
    %161 = vmatpush2.bf16.msra.mxu0 0
    %162 = vmatprep.subr.bf16.mxu0 0
    %163 = vmatpush2.bf16.msra.mxu0 0
    %164 = vmatprep.subr.bf16.mxu0 0
    %165 = vmatpush2.bf16.msra.mxu0 0
    %166 = vmatprep.subr.bf16.mxu0 0
    %167 = vmatpush2.bf16.msra.mxu0 0
    %168 = vmatprep.subr.bf16.mxu0 0
    %169 = vmatpush2.bf16.msra.mxu0 0
    %170 = vmatprep.subr.bf16.mxu0 0
    %171 = vmatpush2.bf16.msra.mxu0 0
    %172 = vmatprep.subr.bf16.mxu0 0
    %173 = vmatpush2.bf16.msra.mxu0 0
    %174 = vmatprep.mubr.bf16.mxu0 0
    %175 = vmatmul.mubr.bf16.gmra.mxu0 %v92
    %v176 = vpop.f32.mrf.mxu0
    %v177 = vadd.f32 %v86, %v176
    %v178 = vpop.f32.mrf.mxu0
    %v179 = vpop.f32.mrf.mxu0
    %v180 = vadd.f32 %v86, %v179
    %v181 = vpop.f32.mrf.mxu0
    %182 = vdwg.mxu0
    %v183 = vld [vmem:[#allocation5] sm:$0xf]
    %v184 = vld [vmem:[#allocation5 + $0x4] sm:$0xf]
    %v185 = vpack.c.bf16 %v180, %v177
    %v186 = vld [vmem:[%s4] sm:$0x1]
    %v188 = vlaneseq
    %v189 = vshrl.u32 %v188, 7
    %v190 = vsub.s32 0, %v189
    %v191 = vrot.slane %v186, %v190
    %v195 = vunpack.c.l.b16 %v183
    %v196 = vunpack.c.l.b16 %v184
    %v197 = vpack.c.b16 %v196, %v195
    %vm198 = vcmask 130048
    %v200 = vsel %vm198, %v197, 0
    %202 = vmatprep.subr.bf16.mxu0 0
    %203 = vmatpush1.bf16.msra.mxu0 0
    %204 = vmatprep.subr.bf16.mxu0 0
    %205 = vmatpush1.bf16.msra.mxu0 0
    %206 = vmatprep.subr.bf16.mxu0 0
    %207 = vmatpush1.bf16.msra.mxu0 0
    %208 = vmatprep.subr.bf16.mxu0 0
    %209 = vmatpush1.bf16.msra.mxu0 0
    %210 = vmatprep.subr.bf16.mxu0 0
    %211 = vmatpush1.bf16.msra.mxu0 0
    %212 = vmatprep.subr.bf16.mxu0 0
    %213 = vmatpush1.bf16.msra.mxu0 0
    %214 = vmatprep.subr.bf16.mxu0 0
    %215 = vmatpush1.bf16.msra.mxu0 0
    %216 = vmatprep.subr.bf16.mxu0 0
    %217 = vmatpush1.bf16.msra.mxu0 %v185
    %218 = vmatprep.subr.bf16.mxu0 0
    %219 = vmatpush2.bf16.msra.mxu0 0
    %220 = vmatprep.subr.bf16.mxu0 0
    %221 = vmatpush2.bf16.msra.mxu0 0
    %222 = vmatprep.subr.bf16.mxu0 0
    %223 = vmatpush2.bf16.msra.mxu0 0
    %224 = vmatprep.subr.bf16.mxu0 0
    %225 = vmatpush2.bf16.msra.mxu0 0
    %226 = vmatprep.subr.bf16.mxu0 0
    %227 = vmatpush2.bf16.msra.mxu0 0
    %228 = vmatprep.subr.bf16.mxu0 0
    %229 = vmatpush2.bf16.msra.mxu0 0
    %230 = vmatprep.subr.bf16.mxu0 0
    %231 = vmatpush2.bf16.msra.mxu0 0
    %232 = vmatprep.subr.bf16.mxu0 0
    %233 = vmatpush2.bf16.msra.mxu0 0
    %234 = vmatprep.mubr.bf16.mxu0 0
    %235 = vmatmul.mubr.bf16.gmra.mxu0 %v200
    %v236 = vpop.f32.mrf.mxu0
    %v237 = vadd.f32 %v191, %v236
    %v238 = vpop.f32.mrf.mxu0
    %v239 = vpop.f32.mrf.mxu0
    %v240 = vadd.f32 %v191, %v239
    %v241 = vpop.f32.mrf.mxu0
    %242 = vdwg.mxu0
    %243 = vst [vmem:[#allocation8] sm:$0xff] %v237
    %244 = vst [vmem:[#allocation8 + $0x8] sm:$0xff] %v240
    // Predicated region
    $region34: #{tpu_custom_call.1} parent=1 // pred_check
      _
    $region35: #{tpu_custom_call.1} parent=1 // pred_check_branch
      %246 = sbr.rel (0) target = $region37
    $region36: #{tpu_custom_call.1} parent=1 // pred_region
      %s248 = ssub.s32 256, 256
      %249 = vsyncadd [#allocation4], %s248
      %s250 = sshll.u32 [#allocation8], 4
      %s251 = int_to_ptr.vmem [resolvable:$true] %s250
      %256 = dma.vmem_to_hbm [thread:$0]  %s251, 256, %s5, [#allocation4], 128, 128, 8
    $region37: #{tpu_custom_call.1} parent=1 // pred_fallthru
      _
    // Predicated region
    $region38: #{tpu_custom_call.1} parent=1 // pred_check
      _
    $region39: #{tpu_custom_call.1} parent=1 // pred_check_branch
      %258 = sbr.rel (0) target = $region41
    $region40: #{tpu_custom_call.1} parent=1 // pred_region
      %259 = dma.done [#allocation4], 256
    $region41: #{tpu_custom_call.1} parent=1 // pred_fallthru
      _
    %260 = vsyncpa [#allocation3], 1
    %261 = vsyncpa [#allocation6], 1
    %262 = vsyncpa [#allocation4], 1

</llo_original>
